<compile_context>
chip_gen: v5e
topology: v5e:2x2
jax: 0.10.0
libtpu: 0.0.40
codegen_flags: <defaults>
</compile_context>

<pallas_src>
import jax
import jax.numpy as jnp
from jax.experimental import pallas as pl
from jax.experimental.pallas import tpu as pltpu

_EPS = 1e-10
_MAX_LANES = 4096               # widest lane-dense last dim we will use
_TILE_BYTES = 2 * 1024 * 1024   # ~2 MiB per VMEM buffer; in+out double
                                # buffered => <= 8 MiB total (v5e-safe)


def _sublane_multiple(dtype) -> int:
    """Minimum sublane tile for a dtype: 8 (4B), 16 (2B), 32 (1B)."""
    itemsize = jnp.dtype(dtype).itemsize
    return max(8, 32 // max(1, itemsize))


def _largest_divisor_leq(n: int, cap: int) -> int:
    for d in range(max(1, min(n, cap)), 0, -1):
        if n % d == 0:
            return d
    return 1


def _choose_layout(total: int, sublane: int, itemsize: int):
    """Pick (lanes, rows, tile_rows) with rows * lanes == total exactly.

    lanes is a multiple of 128 (full unmasked vst), rows and tile_rows are
    multiples of `sublane`.  Returns None if no such factorization exists.
    """
    if total % 128 != 0:
        return None
    m = total // 128
    for k in range(min(_MAX_LANES // 128, m), 0, -1):
        if m % k != 0:
            continue
        lanes = 128 * k
        rows = total // lanes
        if rows % sublane != 0:
            continue
        # Largest tile_rows that divides rows, is a multiple of `sublane`,
        # and keeps the per-buffer tile around _TILE_BYTES.
        budget_rows = max(
            sublane, (_TILE_BYTES // (lanes * itemsize)) // sublane * sublane
        )
        tile_rows = sublane * _largest_divisor_leq(
            rows // sublane, budget_rows // sublane
        )
        return lanes, rows, tile_rows
    return None


def _log_rainfall_kernel(params_ref, z_ref, out_ref):
    # params_ref: SMEM f32[2] == [log_a, b]  (scalar prefetch)
    log_a = params_ref[0]
    b = params_ref[1]
    z = z_ref[...].astype(jnp.float32)
    out_ref[...] = (log_a + b * jnp.log(z + _EPS)).astype(out_ref.dtype)


def log_rainfall_estimation(Z_H, log_a, b):
    """JAX wrapper reproducing LogRainfallEstimationModel.forward (any shape)."""
    orig_shape = Z_H.shape
    out_dtype = jnp.result_type(Z_H.dtype, jnp.float32)
    in_itemsize = jnp.dtype(Z_H.dtype).itemsize
    out_itemsize = jnp.dtype(out_dtype).itemsize
    itemsize = max(in_itemsize, out_itemsize)
    sublane = max(_sublane_multiple(Z_H.dtype), _sublane_multiple(out_dtype))

    total = Z_H.size
    layout = _choose_layout(total, sublane, itemsize)

    padded_total = total
    if layout is None:
        # Rare ragged fallback: pad minimally so a lane-dense layout exists.
        # The main path above is completely pad/slice free.
        align = sublane * 128
        padded_total = -(-total // align) * align
        layout = _choose_layout(padded_total, sublane, itemsize)

    lanes, rows, tile_rows = layout
    num_tiles = rows // tile_rows

    z_flat = Z_H.reshape(-1)
    if padded_total != total:
        # log(1 + eps) ~ 0 in the (discarded) padded region -> benign.
        z_flat = jnp.pad(z_flat, (0, padded_total - total), constant_values=1.0)
    z2d = z_flat.reshape(rows, lanes)

    params = jnp.asarray([log_a, b], dtype=jnp.float32)

    cost = pl.CostEstimate(
        flops=2 * padded_total,
        transcendentals=padded_total,
        bytes_accessed=padded_total * (in_itemsize + out_itemsize),
    )

    out2d = pl.pallas_call(
        _log_rainfall_kernel,
        out_shape=jax.ShapeDtypeStruct((rows, lanes), out_dtype),
        grid_spec=pltpu.PrefetchScalarGridSpec(
            num_scalar_prefetch=1,
            grid=(num_tiles,),
            in_specs=[pl.BlockSpec((tile_rows, lanes), lambda i, params: (i, 0))],
            out_specs=pl.BlockSpec((tile_rows, lanes), lambda i, params: (i, 0)),
        ),
        compiler_params=pltpu.CompilerParams(
            dimension_semantics=("parallel",),
        ),
        cost_estimate=cost,
    )(params, z2d)

    out_flat = out2d.reshape(-1)
    if padded_total != total:
        out_flat = out_flat[:total]
    return out_flat.reshape(orig_shape)


if __name__ == "__main__":
    # Parameter init matching the PyTorch module: log_a = 0.0, b = 1.0.
    log_a = jnp.float32(0.0)
    b = jnp.float32(1.0)

    # Small deterministic NCHW input (batch=2, channels=4, spatial=16x16),
    # strictly positive reflectivity values.
    key = jax.random.PRNGKey(0)
    Z_H = jax.random.uniform(
        key, (2, 4, 16, 16), dtype=jnp.float32, minval=0.1, maxval=100.0
    )

    log_R = log_rainfall_estimation(Z_H, log_a, b)
    log_R = jax.block_until_ready(log_R)

    # Reference check in plain JAX.
    ref = log_a + b * jnp.log(Z_H + 1e-10)
    assert log_R.shape == Z_H.shape
    assert log_R.dtype == ref.dtype
    assert jnp.allclose(log_R, ref, atol=1e-5, rtol=1e-5)

    print("KERNEL_OK")
</pallas_src>

<mosaic_0001>
module attributes {stable_mosaic.version = 11 : i64} {
  func.func @_log_rainfall_kernel(%arg0: i32, %arg1: memref<2xf32, #tpu.memory_space<smem>>, %arg2: memref<8x256xf32, #tpu.memory_space<vmem>>, %arg3: memref<8x256xf32, #tpu.memory_space<vmem>>) attributes {dimension_semantics = [#tpu.dimension_semantics<parallel>], iteration_bounds = array<i64: 1>, scalar_prefetch = 1 : i64, scratch_operands = 0 : i64, tpu.core_type = #tpu.core_type<tc>, window_params = [{transform_indices = @transform_0, window_bounds = array<i64: 8, 256>}, {transform_indices = @transform_1, window_bounds = array<i64: 8, 256>}]} {
    %c0 = arith.constant 0 : index
    %0 = memref.load %arg1[%c0] : memref<2xf32, #tpu.memory_space<smem>>
    %c1 = arith.constant 1 : index
    %1 = memref.load %arg1[%c1] : memref<2xf32, #tpu.memory_space<smem>>
    %c0_0 = arith.constant 0 : index
    %c0_1 = arith.constant 0 : index
    %2 = vector.load %arg2[%c0_0, %c0_1] : memref<8x256xf32, #tpu.memory_space<vmem>>, vector<8x256xf32>
    %cst = arith.constant 1.000000e-10 : f32
    %3 = vector.broadcast %cst : f32 to vector<8x256xf32>
    %4 = arith.addf %2, %3 : vector<8x256xf32>
    %5 = math.log %4 : vector<8x256xf32>
    %6 = vector.broadcast %1 : f32 to vector<8x256xf32>
    %7 = arith.mulf %6, %5 : vector<8x256xf32>
    %8 = vector.broadcast %0 : f32 to vector<8x256xf32>
    %9 = arith.addf %8, %7 : vector<8x256xf32>
    %c0_2 = arith.constant 0 : index
    %c0_3 = arith.constant 0 : index
    %10 = vector.load %arg3[%c0_2, %c0_3] : memref<8x256xf32, #tpu.memory_space<vmem>>, vector<8x256xf32>
    tpu.vector_store %arg3[%c0_2, %c0_3], %9 {strides = array<i32>} : memref<8x256xf32, #tpu.memory_space<vmem>>, vector<8x256xf32>,
    return
  }
  func.func @transform_0(%arg0: i32, %arg1: memref<2xf32, #tpu.memory_space<smem>>) -> (i32, i32) {
    %c0_i32 = arith.constant 0 : i32
    %c0_i32_0 = arith.constant 0 : i32
    return %arg0, %c0_i32 : i32, i32
  }
  func.func @transform_1(%arg0: i32, %arg1: memref<2xf32, #tpu.memory_space<smem>>) -> (i32, i32) {
    %c0_i32 = arith.constant 0 : i32
    %c0_i32_0 = arith.constant 0 : i32
    return %arg0, %c0_i32 : i32, i32
  }
}

</mosaic_0001>

<llo_original>
// kernel: tpu_custom_call.1
$region0: #{tpu_custom_call.1}
  #allocation0 [shape = 'u32[]', space=smem, size = 0x4, offset = 0x4, fixed_abs, tag = 'smem constant byte address 0x4 - core index']
  #allocation1 [shape = 'u32[72,128]{1,0:T(1,128)}', space=vmem, size = 0x9000, scoped, tag = 'internal scratch']
  #allocation2 [shape = 's32[1]{0}', space=sflag, size = 0x4, scoped, tag = 'scoped memory for tpu_custom_call.1']
  #allocation3 [shape = 'u8[512]{0}', space=smem, size = 0x200, scoped, tag = 'prefetched SMEM operand 0']
  %s0 = inlined_call_operand.hbm [shape: f32[2], index: 0, kind: input, shape index: {}]
  %s1 = inlined_call_operand.hbm [shape: f32[8,256], index: 1, kind: input, shape index: {}]
  %s2 = inlined_call_operand.hbm [shape: f32[8,256], index: 2, kind: output, shape index: {}]
  %s3 = sld [smem:[#allocation0]]
  $region18: #{tpu_custom_call.1} parent=0
    _
  %s5 = ssub.s32 1, %s3
  %s6 = scalar_select 0, %s5, %s3
  %s8 = sshll.u32 %s0, 4
  %s9 = int_to_ptr.hbm [resolvable:$true] %s8
  %11 = dma.hbm_to_smem %s9, 16, [#allocation3], [#allocation2]
  %13 = dma.done [#allocation2], 16
  %14 = sfence
  $region1: #{tpu_custom_call.1} parent=0
    #allocation4 [shape = 'u8[8192]{0}', space=vmem, size = 0x2000, scoped, tag = 'input window, operand 1, single buffered']
    #allocation5 [shape = 's32[1]{0}', space=sflag, size = 0x4, scoped, tag = 'scoped memory for tpu_custom_call.1']
    #allocation6 [shape = 's32[1]{0}', space=sflag, size = 0x4, scoped, tag = 'scoped memory for tpu_custom_call.1']
    #allocation7 [shape = 'u8[8192]{0}', space=vmem, size = 0x2000, scoped, tag = 'output window, operand 0, single buffered']
    %15 = vsyncpa [#allocation5], 0
    %16 = vsyncpa [#allocation6], 0
    // Predicated region
    $region2: #{tpu_custom_call.1} parent=1 // pred_check
      _
    $region3: #{tpu_custom_call.1} parent=1 // pred_check_branch
      %18 = sbr.rel (0) target = $region5
    $region4: #{tpu_custom_call.1} parent=1 // pred_region
      %20 = vsyncadd [#allocation5], 0
      %s22 = sshll.u32 %s1, 4
      %s23 = int_to_ptr.hbm [resolvable:$true] %s22
      %s24 = sshll.u32 [#allocation4], 4
      %s25 = int_to_ptr.vmem [resolvable:$true] %s24
      %27 = dma.hbm_to_vmem [thread:$0]  %s23, 256, %s25, [#allocation5]
    $region5: #{tpu_custom_call.1} parent=1 // pred_fallthru
      _
    // Predicated region
    $region6: #{tpu_custom_call.1} parent=1 // pred_check
      _
    $region7: #{tpu_custom_call.1} parent=1 // pred_check_branch
      %29 = sbr.rel (0) target = $region9
    $region8: #{tpu_custom_call.1} parent=1 // pred_region
      %31 = dma.done [#allocation5], 256
    $region9: #{tpu_custom_call.1} parent=1 // pred_fallthru
      _
    %s32 = sld [smem:[#allocation3]]
    %s33 = sld [smem:[#allocation3 + $0x1]]
    %v34 = vld [vmem:[#allocation4] sm:$0xff]
    %v35 = vld [vmem:[#allocation4 + $0x8] sm:$0xff]
    %v36 = vadd.f32 %v34, 1e-10
    %v37 = vadd.f32 %v35, 1e-10
    %v38 = vlog2.pop %v36
    %v39 = vmul.f32 %v38, 0.6931472
    %v40 = vlog2.pop %v37
    %v41 = vmul.f32 %v40, 0.6931472
    %v42 = vstv %s33
    %v43 = vmul.f32 %v42, %v39
    %v44 = vmul.f32 %v42, %v41
    %v45 = vstv %s32
    %v46 = vadd.f32 %v45, %v43
    %v47 = vadd.f32 %v45, %v44
    %48 = vst [vmem:[#allocation7] sm:$0xff] %v46
    %49 = vst [vmem:[#allocation7 + $0x8] sm:$0xff] %v47
    // Predicated region
    $region10: #{tpu_custom_call.1} parent=1 // pred_check
      _
    $region11: #{tpu_custom_call.1} parent=1 // pred_check_branch
      %51 = sbr.rel (0) target = $region13
    $region12: #{tpu_custom_call.1} parent=1 // pred_region
      %53 = vsyncadd [#allocation6], 0
      %s55 = sshll.u32 [#allocation7], 4
      %s56 = int_to_ptr.vmem [resolvable:$true] %s55
      %s57 = sshll.u32 %s2, 4
      %s58 = int_to_ptr.hbm [resolvable:$true] %s57
      %60 = dma.vmem_to_hbm [thread:$0]  %s56, 256, %s58, [#allocation6]
    $region13: #{tpu_custom_call.1} parent=1 // pred_fallthru
      _
    // Predicated region
    $region14: #{tpu_custom_call.1} parent=1 // pred_check
      _
    $region15: #{tpu_custom_call.1} parent=1 // pred_check_branch
      %62 = sbr.rel (0) target = $region17
    $region16: #{tpu_custom_call.1} parent=1 // pred_region
      %64 = dma.done [#allocation6], 256
    $region17: #{tpu_custom_call.1} parent=1 // pred_fallthru
      _
    %65 = vsyncpa [#allocation5], 1
    %66 = vsyncpa [#allocation6], 1

</llo_original>
